<compile_context>
chip_gen: v6e
topology: v6e:2x2x1
jax: 0.10.0
libtpu: 0.0.40
codegen_flags: <defaults>
</compile_context>

<pallas_src>
import functools

import jax
import jax.numpy as jnp
from jax.experimental import pallas as pl
from jax.experimental.pallas import tpu as pltpu


_LANE = 128


def _round_up(x, m):
    return (x + m - 1) // m * m


def actor_kernel(params_ref, obs_ref, thr_ref, out_ref):
    """One grid step over a lane block of the batch.

    params_ref : SMEM (8,) f32 -> [a1, a2, b1, b2, m1, m2, pad, pad]
    obs_ref    : VMEM (2, bb) f32 -> row0 = obs[:,0], row1 = obs[:,1]
    thr_ref    : VMEM (1, bb) f32 -> 0.5 (deterministic) or uniform samples u
    out_ref    : VMEM (4, bb) f32 -> rows [action, logp, entropy, p]
    """
    a1 = params_ref[0]
    a2 = params_ref[1]
    b1 = params_ref[2]
    b2 = params_ref[3]
    m1 = params_ref[4]
    m2 = params_ref[5]

    obs_x = obs_ref[0:1, :]            # obs[:, 0]
    obs_y = obs_ref[1:2, :]            # obs[:, 1]
    # Scalar*scalar on the scalar ALU, then a scalar-broadcast VPU FMA chain.
    d = (m1 * a1) * (obs_y + b1) + (m2 * a2) * (obs_x + b2)

    # Stable sigmoid / log-prob with 2 transcendentals total.
    ed = jnp.exp(-jnp.abs(d))                       # exp(-|d|)   (EUP)
    sp = jnp.maximum(-d, 0.0) + jnp.log(1.0 + ed)   # softplus(-d)(EUP log)
    r = 1.0 / (1.0 + ed)
    p = jnp.where(d >= 0.0, r, ed * r)              # sigmoid(d)

    log_p1 = -sp                                    # log p
    log_p0 = -d - sp                                # log(1 - p)

    take1 = p > thr_ref[...]                        # strict >, as in the module
    act = jnp.where(take1, 1.0, 0.0)
    logp = jnp.where(take1, log_p1, log_p0)
    ent = sp + d * (1.0 - p)                        # -p log p - (1-p) log(1-p)

    out_ref[...] = jnp.concatenate([act, logp, ent, p], axis=0)


@functools.partial(jax.jit, static_argnames=("deterministic", "block_b"))
def _actor_pallas(obs_t, params, key, deterministic, block_b):
    B = obs_t.shape[1]
    if deterministic:
        thr = jnp.full((1, B), 0.5, dtype=jnp.float32)
    else:
        # One uniform per row: rand < p  <=>  p > u (strict >).
        thr = jax.random.uniform(key, (1, B), dtype=jnp.float32)

    return pl.pallas_call(
        actor_kernel,
        out_shape=jax.ShapeDtypeStruct((4, B), jnp.float32),
        grid=(B // block_b,),
        in_specs=[
            pl.BlockSpec(memory_space=pltpu.MemorySpace.SMEM),      # params
            pl.BlockSpec((2, block_b), lambda i: (0, i)),           # obs (2,B)
            pl.BlockSpec((1, block_b), lambda i: (0, i)),           # threshold
        ],
        out_specs=pl.BlockSpec((4, block_b), lambda i: (0, i)),
        compiler_params=pltpu.CompilerParams(
            dimension_semantics=("parallel",)),                     # v7x 2-TC split
    )(params, obs_t, thr)


def actor_forward_batched(obs, a1, a2, b1, b2, microstimulation=None,
                          deterministic=True, key=None):
    """Batched forward: obs of shape (B, 2) -> (actions i32[B], logp f32[B],
    entropy f32[B]), all device arrays (no host sync)."""
    obs = jnp.asarray(obs, dtype=jnp.float32).reshape(-1, 2)
    n = obs.shape[0]
    block_b = min(_round_up(max(n, 1), _LANE), 4096)
    B = _round_up(n, block_b)
    if B != n:
        obs = jnp.concatenate(
            [obs, jnp.zeros((B - n, 2), dtype=jnp.float32)], axis=0)
    obs_t = obs.T                                   # (2, B): lane-dense batch

    if microstimulation is None:
        m1, m2 = 1.0, 1.0
    else:
        m1, m2 = float(microstimulation[0]), float(microstimulation[1])
    # For a hot rollout loop, build `params` once outside the loop and call
    # _actor_pallas directly.
    params = jnp.array([a1, a2, b1, b2, m1, m2, 0.0, 0.0], dtype=jnp.float32)

    if key is None:
        key = jax.random.PRNGKey(0)

    out = _actor_pallas(obs_t, params, key, deterministic, block_b)
    actions = out[0, :n].astype(jnp.int32)
    logps = out[1, :n]
    ents = out[2, :n]
    return actions, logps, ents


def actor_forward(obs, a1, a2, b1, b2, microstimulation=None,
                  deterministic=True, key=None):
    """Single-observation path mirroring ActorNaim.forward: returns
    (int action, logp, entropy).  NOTE: the int() conversion forces a
    device->host sync; prefer actor_forward_batched in hot loops."""
    obs = jnp.asarray(obs, dtype=jnp.float32).reshape(1, 2)
    acts, logps, ents = actor_forward_batched(
        obs, a1, a2, b1, b2, microstimulation, deterministic, key)
    return int(acts[0]), logps[0], ents[0]


if __name__ == "__main__":
    key = jax.random.PRNGKey(0)
    k_obs, k_a1, k_a2, k_b1, k_b2, k_u = jax.random.split(key, 6)

    # Parameter "init" (the module uses np.random.rand() scalars).
    a1 = float(jax.random.uniform(k_a1, ()))
    a2 = float(jax.random.uniform(k_a2, ()))
    b1 = float(jax.random.uniform(k_b1, ()))
    b2 = float(jax.random.uniform(k_b2, ()))

    # Batched observations (inp_size == 2); range [-2, 2] so both actions occur.
    B = 256
    obs = jax.random.uniform(k_obs, (B, 2), dtype=jnp.float32,
                             minval=-2.0, maxval=2.0)

    # ---- deterministic, batched ----
    acts, logps, ents = actor_forward_batched(
        obs, a1, a2, b1, b2, deterministic=True)
    jax.block_until_ready((acts, logps, ents))

    # Pure-JAX reference.
    d_ref = a1 * (obs[:, 1] + b1) + a2 * (obs[:, 0] + b2)
    p_ref = 1.0 / (1.0 + jnp.exp(-d_ref))
    a_ref = (p_ref > 0.5).astype(jnp.int32)
    logp_ref = jnp.where(p_ref > 0.5, jnp.log(p_ref), jnp.log1p(-p_ref))
    ent_ref = -p_ref * jnp.log(p_ref) - (1.0 - p_ref) * jnp.log1p(-p_ref)

    assert bool(jnp.array_equal(acts, a_ref))
    assert float(jnp.max(jnp.abs(logps - logp_ref))) < 1e-5
    assert float(jnp.max(jnp.abs(ents - ent_ref))) < 1e-5

    # ---- single-obs path (module signature), with microstimulation ----
    ms = (0.25, 0.75)
    a_ms, logp_ms, ent_ms = actor_forward(
        obs[0], a1, a2, b1, b2, microstimulation=ms, deterministic=True)
    d_ms = ms[0] * a1 * (obs[0, 1] + b1) + ms[1] * a2 * (obs[0, 0] + b2)
    p_ms = 1.0 / (1.0 + jnp.exp(-d_ms))
    logp_ms_ref = jnp.where(p_ms > 0.5, jnp.log(p_ms), jnp.log1p(-p_ms))
    assert a_ms == int(p_ms > 0.5)
    assert abs(float(logp_ms) - float(logp_ms_ref)) < 1e-5

    # ---- stochastic path: exercise it (uniform drawn per row from k_u) ----
    acts_s, logps_s, ents_s = actor_forward_batched(
        obs, a1, a2, b1, b2, deterministic=False, key=k_u)
    jax.block_until_ready(acts_s)
    assert bool(jnp.all((acts_s == 0) | (acts_s == 1)))

    print("KERNEL_OK")
</pallas_src>

<mosaic_0001>
module attributes {stable_mosaic.version = 11 : i64} {
  func.func @actor_kernel(%arg0: i32, %arg1: memref<8xf32, #tpu.memory_space<smem>>, %arg2: memref<2x256xf32, #tpu.memory_space<vmem>>, %arg3: memref<1x256xf32, #tpu.memory_space<vmem>>, %arg4: memref<4x256xf32, #tpu.memory_space<vmem>>) attributes {dimension_semantics = [#tpu.dimension_semantics<parallel>], iteration_bounds = array<i64: 1>, scalar_prefetch = 0 : i64, scratch_operands = 0 : i64, tpu.core_type = #tpu.core_type<tc>, window_params = [{transform_indices = @transform_0, window_bounds = array<i64: 8>}, {transform_indices = @transform_1, window_bounds = array<i64: 2, 256>}, {transform_indices = @transform_2, window_bounds = array<i64: 1, 256>}, {transform_indices = @transform_3, window_bounds = array<i64: 4, 256>}]} {
    %c0 = arith.constant 0 : index
    %0 = memref.load %arg1[%c0] : memref<8xf32, #tpu.memory_space<smem>>
    %c1 = arith.constant 1 : index
    %1 = memref.load %arg1[%c1] : memref<8xf32, #tpu.memory_space<smem>>
    %c2 = arith.constant 2 : index
    %2 = memref.load %arg1[%c2] : memref<8xf32, #tpu.memory_space<smem>>
    %c3 = arith.constant 3 : index
    %3 = memref.load %arg1[%c3] : memref<8xf32, #tpu.memory_space<smem>>
    %c4 = arith.constant 4 : index
    %4 = memref.load %arg1[%c4] : memref<8xf32, #tpu.memory_space<smem>>
    %c5 = arith.constant 5 : index
    %5 = memref.load %arg1[%c5] : memref<8xf32, #tpu.memory_space<smem>>
    %c0_0 = arith.constant 0 : index
    %c0_1 = arith.constant 0 : index
    %6 = vector.load %arg2[%c0_0, %c0_1] : memref<2x256xf32, #tpu.memory_space<vmem>>, vector<1x256xf32>
    %c1_2 = arith.constant 1 : index
    %c0_3 = arith.constant 0 : index
    %7 = vector.load %arg2[%c1_2, %c0_3] : memref<2x256xf32, #tpu.memory_space<vmem>>, vector<1x256xf32>
    %8 = arith.mulf %4, %0 : f32
    %9 = vector.broadcast %2 : f32 to vector<1x256xf32>
    %10 = arith.addf %7, %9 : vector<1x256xf32>
    %11 = vector.broadcast %8 : f32 to vector<1x256xf32>
    %12 = arith.mulf %11, %10 : vector<1x256xf32>
    %13 = arith.mulf %5, %1 : f32
    %14 = vector.broadcast %3 : f32 to vector<1x256xf32>
    %15 = arith.addf %6, %14 : vector<1x256xf32>
    %16 = vector.broadcast %13 : f32 to vector<1x256xf32>
    %17 = arith.mulf %16, %15 : vector<1x256xf32>
    %18 = arith.addf %12, %17 : vector<1x256xf32>
    %19 = math.absf %18 : vector<1x256xf32>
    %cst = arith.constant 0.000000e+00 : f32
    %20 = vector.broadcast %cst : f32 to vector<1x256xf32>
    %21 = arith.subf %20, %19 : vector<1x256xf32>
    %22 = math.exp %21 : vector<1x256xf32>
    %cst_4 = arith.constant 0.000000e+00 : f32
    %23 = vector.broadcast %cst_4 : f32 to vector<1x256xf32>
    %24 = arith.subf %23, %18 : vector<1x256xf32>
    %cst_5 = arith.constant 0.000000e+00 : f32
    %25 = vector.broadcast %cst_5 : f32 to vector<1x256xf32>
    %26 = arith.maximumf %24, %25 : vector<1x256xf32>
    %cst_6 = arith.constant 1.000000e+00 : f32
    %27 = vector.broadcast %cst_6 : f32 to vector<1x256xf32>
    %28 = arith.addf %27, %22 : vector<1x256xf32>
    %29 = math.log %28 : vector<1x256xf32>
    %30 = arith.addf %26, %29 : vector<1x256xf32>
    %cst_7 = arith.constant 1.000000e+00 : f32
    %31 = vector.broadcast %cst_7 : f32 to vector<1x256xf32>
    %32 = arith.addf %31, %22 : vector<1x256xf32>
    %cst_8 = arith.constant 1.000000e+00 : f32
    %33 = vector.broadcast %cst_8 : f32 to vector<1x256xf32>
    %34 = arith.divf %33, %32 : vector<1x256xf32>
    %cst_9 = arith.constant 0.000000e+00 : f32
    %35 = vector.broadcast %cst_9 : f32 to vector<1x256xf32>
    %36 = arith.cmpf oge, %18, %35 : vector<1x256xf32>
    %37 = arith.mulf %22, %34 : vector<1x256xf32>
    %38 = arith.select %36, %34, %37 : vector<1x256xi1>, vector<1x256xf32>
    %cst_10 = arith.constant 0.000000e+00 : f32
    %39 = vector.broadcast %cst_10 : f32 to vector<1x256xf32>
    %40 = arith.subf %39, %30 : vector<1x256xf32>
    %cst_11 = arith.constant 0.000000e+00 : f32
    %41 = vector.broadcast %cst_11 : f32 to vector<1x256xf32>
    %42 = arith.subf %41, %18 : vector<1x256xf32>
    %43 = arith.subf %42, %30 : vector<1x256xf32>
    %c0_12 = arith.constant 0 : index
    %c0_13 = arith.constant 0 : index
    %44 = vector.load %arg3[%c0_12, %c0_13] : memref<1x256xf32, #tpu.memory_space<vmem>>, vector<1x256xf32>
    %45 = arith.cmpf ogt, %38, %44 : vector<1x256xf32>
    %cst_14 = arith.constant 1.000000e+00 : f32
    %cst_15 = arith.constant 0.000000e+00 : f32
    %46 = vector.broadcast %cst_14 : f32 to vector<1x256xf32>
    %47 = vector.broadcast %cst_15 : f32 to vector<1x256xf32>
    %48 = arith.select %45, %46, %47 : vector<1x256xi1>, vector<1x256xf32>
    %49 = arith.select %45, %40, %43 : vector<1x256xi1>, vector<1x256xf32>
    %cst_16 = arith.constant 1.000000e+00 : f32
    %50 = vector.broadcast %cst_16 : f32 to vector<1x256xf32>
    %51 = arith.subf %50, %38 : vector<1x256xf32>
    %52 = arith.mulf %18, %51 : vector<1x256xf32>
    %53 = arith.addf %30, %52 : vector<1x256xf32>
    %54 = tpu.concatenate %48, %49, %53, %38 in 0 : vector<1x256xf32>, vector<1x256xf32>, vector<1x256xf32>, vector<1x256xf32> -> vector<4x256xf32>
    %c0_17 = arith.constant 0 : index
    %c0_18 = arith.constant 0 : index
    %55 = vector.load %arg4[%c0_17, %c0_18] : memref<4x256xf32, #tpu.memory_space<vmem>>, vector<4x256xf32>
    tpu.vector_store %arg4[%c0_17, %c0_18], %54 {strides = array<i32>} : memref<4x256xf32, #tpu.memory_space<vmem>>, vector<4x256xf32>,
    return
  }
  func.func @transform_0(%arg0: i32) -> i32 {
    %c0_i32 = arith.constant 0 : i32
    %c0_i32_0 = arith.constant 0 : i32
    return %c0_i32 : i32
  }
  func.func @transform_1(%arg0: i32) -> (i32, i32) {
    %c0_i32 = arith.constant 0 : i32
    %c0_i32_0 = arith.constant 0 : i32
    return %c0_i32, %arg0 : i32, i32
  }
  func.func @transform_2(%arg0: i32) -> (i32, i32) {
    %c0_i32 = arith.constant 0 : i32
    %c0_i32_0 = arith.constant 0 : i32
    return %c0_i32, %arg0 : i32, i32
  }
  func.func @transform_3(%arg0: i32) -> (i32, i32) {
    %c0_i32 = arith.constant 0 : i32
    %c0_i32_0 = arith.constant 0 : i32
    return %c0_i32, %arg0 : i32, i32
  }
}

</mosaic_0001>

<llo_original>
// kernel: _actor_pallas.1
$region0: #{_actor_pallas.1}
  #allocation0 [shape = 'u32[]', space=smem, size = 0x4, offset = 0x4, fixed_abs, tag = 'smem constant byte address 0x4 - core index']
  #allocation1 [shape = 'u32[144,128]{1,0:T(1,128)}', space=vmem, size = 0x12000, scoped, tag = 'internal scratch']
  %s0 = inlined_call_operand.vmem [shape: f32[8], index: 0, kind: input, shape index: {}]
  %s1 = inlined_call_operand.hbm [shape: f32[2,256], index: 1, kind: input, shape index: {}]
  %s2 = inlined_call_operand.vmem [shape: f32[1,256], index: 2, kind: input, shape index: {}]
  %s3 = inlined_call_operand.hbm [shape: f32[4,256], index: 3, kind: output, shape index: {}]
  %s4 = sld [smem:[#allocation0]]
  $region30: #{_actor_pallas.1} parent=0
    _
  %s6 = ssub.s32 1, %s4
  %s7 = scalar_select 0, %s6, %s4
  $region1: #{_actor_pallas.1} parent=0
    #allocation2 [shape = 'u8[512]{0}', space=smem, size = 0x200, scoped, tag = 'input window, operand 0, single buffered']
    #allocation3 [shape = 's32[1]{0}', space=sflag, size = 0x4, scoped, tag = 'scoped memory for _actor_pallas.1']
    #allocation4 [shape = 's32[1]{0}', space=sflag, size = 0x4, scoped, tag = 'scoped memory for _actor_pallas.1']
    #allocation5 [shape = 's32[1]{0}', space=sflag, size = 0x4, scoped, tag = 'scoped memory for _actor_pallas.1']
    #allocation6 [shape = 'u8[2048]{0}', space=vmem, size = 0x800, scoped, tag = 'input window, operand 1, single buffered']
    #allocation7 [shape = 'u8[4096]{0}', space=vmem, size = 0x1000, scoped, tag = 'output window, operand 0, single buffered']
    %8 = vsyncpa [#allocation5], 0
    %9 = vsyncpa [#allocation3], 0
    %10 = vsyncpa [#allocation4], 0
    // Predicated region
    $region2: #{_actor_pallas.1} parent=1 // pred_check
      _
    $region3: #{_actor_pallas.1} parent=1 // pred_check_branch
      %12 = sbr.rel (0) target = $region5
    $region4: #{_actor_pallas.1} parent=1 // pred_region
      %s14 = ssub.s32 16, 16
      %15 = vsyncadd [#allocation5], %s14
      %s17 = sshll.u32 %s0, 4
      %s18 = int_to_ptr.vmem [resolvable:$true] %s17
      %20 = dma.vmem_to_smem %s18, 16, [#allocation2], [#allocation5]
    $region5: #{_actor_pallas.1} parent=1 // pred_fallthru
      _
    // Predicated region
    $region6: #{_actor_pallas.1} parent=1 // pred_check
      _
    $region7: #{_actor_pallas.1} parent=1 // pred_check_branch
      %22 = sbr.rel (0) target = $region9
    $region8: #{_actor_pallas.1} parent=1 // pred_region
      %s24 = ssub.s32 64, 64
      %25 = vsyncadd [#allocation3], %s24
      %s27 = sshll.u32 [#allocation6], 4
      %s28 = int_to_ptr.vmem [resolvable:$true] %s27
      %30 = dma.hbm_to_vmem [thread:$0]  %s1, 64, %s28, [#allocation3]
    $region9: #{_actor_pallas.1} parent=1 // pred_fallthru
      _
    // Predicated region
    $region10: #{_actor_pallas.1} parent=1 // pred_check
      _
    $region11: #{_actor_pallas.1} parent=1 // pred_check_branch
      %32 = sbr.rel (0) target = $region13
    $region12: #{_actor_pallas.1} parent=1 // pred_region
      _
    $region13: #{_actor_pallas.1} parent=1 // pred_fallthru
      _
    // Predicated region
    $region14: #{_actor_pallas.1} parent=1 // pred_check
      _
    $region15: #{_actor_pallas.1} parent=1 // pred_check_branch
      %34 = sbr.rel (0) target = $region17
    $region16: #{_actor_pallas.1} parent=1 // pred_region
      %35 = dma.done [#allocation5], 16
    $region17: #{_actor_pallas.1} parent=1 // pred_fallthru
      _
    // Predicated region
    $region18: #{_actor_pallas.1} parent=1 // pred_check
      _
    $region19: #{_actor_pallas.1} parent=1 // pred_check_branch
      %37 = sbr.rel (0) target = $region21
    $region20: #{_actor_pallas.1} parent=1 // pred_region
      %38 = dma.done [#allocation3], 64
    $region21: #{_actor_pallas.1} parent=1 // pred_fallthru
      _
    %39 = sfence
    %s40 = sld [smem:[#allocation2]]
    %s41 = sld [smem:[#allocation2 + $0x1]]
    %s42 = sld [smem:[#allocation2 + $0x2]]
    %s43 = sld [smem:[#allocation2 + $0x3]]
    %s44 = sld [smem:[#allocation2 + $0x4]]
    %s45 = sld [smem:[#allocation2 + $0x5]]
    %v46 = vld [vmem:[#allocation6] ss:$2 sm:$0x3]
    %s47 = scalar_lea.vmem [#allocation6], 1
    %v48 = vld [vmem:[%s47] ss:$2 sm:$0x3]
    %s49 = smul.f32 %s44, %s40
    %v50 = vstv %s42
    %v51 = vadd.f32 %v48, %v50
    %v52 = vstv %s49
    %v53 = vmul.f32 %v52, %v51
    %s54 = smul.f32 %s45, %s41
    %v55 = vstv %s43
    %v56 = vadd.f32 %v46, %v55
    %v57 = vstv %s54
    %v58 = vmul.f32 %v57, %v56
    %v59 = vadd.f32 %v53, %v58
    %v60 = vand.u32 2147483647, %v59
    %v61 = vsub.f32 0.0, %v60
    %v62 = vmul.f32 %v61, 1.442695
    %v63 = vpow.pop %v62
    %v64 = vsub.f32 0.0, %v59
    %v65 = vmax.f32 %v64, 0.0
    %v66 = vadd.f32 %v63, 1.0
    %v67 = vlog2.pop %v66
    %v68 = vmul.f32 %v67, 0.6931472
    %v69 = vadd.f32 %v65, %v68
    %v70 = vrcp.pop %v66
    %v71 = vmul.f32 1.0, %v70
    %vm72 = vcmp.ge.f32.partialorder %v59, 0.0
    %v73 = vmul.f32 %v63, %v71
    %v74 = vsel %vm72, %v71, %v73
    %v75 = vsub.f32 0.0, %v69
    %v76 = vsub.f32 %v64, %v69
    %v77 = vld [vmem:[%s2] sm:$0x3]
    %vm78 = vcmp.gt.f32.partialorder %v74, %v77
    %v79 = vsel %vm78, 1.0, 0.0
    %v80 = vsel %vm78, %v75, %v76
    %v81 = vsub.f32 1.0, %v74
    %v82 = vmul.f32 %v59, %v81
    %v83 = vadd.f32 %v69, %v82
    %v85 = vlaneseq
    %v86 = vshrl.u32 %v85, 7
    %v87 = vsub.s32 0, %v86
    %v88 = vrot.slane %v79, %v87
    %v89 = vlaneseq
    %v90 = vshrl.u32 %v89, 7
    %v91 = vsub.s32 1, %v90
    %v92 = vrot.slane %v79, %v91
    %v96 = vlaneseq
    %v97 = vshrl.u32 %v96, 7
    %v98 = vsub.s32 0, %v97
    %v99 = vrot.slane %v80, %v98
    %v100 = vlaneseq
    %v101 = vshrl.u32 %v100, 7
    %v102 = vsub.s32 1, %v101
    %v103 = vrot.slane %v80, %v102
    %v107 = vlaneseq
    %v108 = vshrl.u32 %v107, 7
    %v109 = vsub.s32 0, %v108
    %v110 = vrot.slane %v83, %v109
    %v111 = vlaneseq
    %v112 = vshrl.u32 %v111, 7
    %v113 = vsub.s32 1, %v112
    %v114 = vrot.slane %v83, %v113
    %v118 = vlaneseq
    %v119 = vshrl.u32 %v118, 7
    %v120 = vsub.s32 0, %v119
    %v121 = vrot.slane %v74, %v120
    %v122 = vlaneseq
    %v123 = vshrl.u32 %v122, 7
    %v124 = vsub.s32 1, %v123
    %v125 = vrot.slane %v74, %v124
    %vm128 = vcmask 1040384
    %v129 = vsel %vm128, %v88, %v99
    %v130 = vsel %vm128, %v92, %v103
    %vm131 = vcmask 1041408
    %v132 = vsel %vm131, %v129, %v110
    %v133 = vsel %vm131, %v130, %v114
    %vm134 = vcmask 1042432
    %v135 = vsel %vm134, %v132, %v121
    %v136 = vsel %vm134, %v133, %v125
    %v139 = vcombine.low %v135, %v136
    %141 = vst [vmem:[#allocation7] sm:$0xff] %v139
    // Predicated region
    $region22: #{_actor_pallas.1} parent=1 // pred_check
      _
    $region23: #{_actor_pallas.1} parent=1 // pred_check_branch
      %143 = sbr.rel (0) target = $region25
    $region24: #{_actor_pallas.1} parent=1 // pred_region
      %s145 = ssub.s32 128, 128
      %146 = vsyncadd [#allocation4], %s145
      %s148 = sshll.u32 [#allocation7], 4
      %s149 = int_to_ptr.vmem [resolvable:$true] %s148
      %151 = dma.vmem_to_hbm [thread:$0]  %s149, 128, %s3, [#allocation4]
    $region25: #{_actor_pallas.1} parent=1 // pred_fallthru
      _
    // Predicated region
    $region26: #{_actor_pallas.1} parent=1 // pred_check
      _
    $region27: #{_actor_pallas.1} parent=1 // pred_check_branch
      %153 = sbr.rel (0) target = $region29
    $region28: #{_actor_pallas.1} parent=1 // pred_region
      %154 = dma.done [#allocation4], 128
    $region29: #{_actor_pallas.1} parent=1 // pred_fallthru
      _
    %155 = vsyncpa [#allocation3], 1
    %156 = vsyncpa [#allocation4], 1
    %157 = vsyncpa [#allocation5], 1

</llo_original>
